<compile_context>
chip_gen: v7x
topology: tpu7x:2x2x1
jax: 0.10.0
libtpu: 0.0.40
codegen_flags: <defaults>
</compile_context>

<pallas_src>
import jax
import jax.numpy as jnp
import numpy as np
from jax.experimental import pallas as pl
from jax.experimental.pallas import tpu as pltpu


def _implicit_m_kernel(x_ref, s_ref, o_ref):
    # x_ref: (t_rows, t_hw) tile of the flattened (N*C, H*W) input.
    # s_ref: (t_rows, 1) per-row scale (one scalar per (n, c) row).
    # Pure VPU broadcast-multiply; output stores are lane-dense.
    o_ref[...] = x_ref[...] * s_ref[...]


def _pick_tile(dim, unit, cap):
    """Tile size for one axis: the full dim if it is <= one hardware unit,
    otherwise the largest multiple of `unit` that is <= min(dim, cap)."""
    if dim <= unit:
        return dim
    return min(cap, (dim // unit) * unit)


@jax.jit
def implicit_m(x_nchw, implicit):
    """ImplicitM forward: implicit (1, C, 1, 1) broadcast-multiplied with x (N, C, H, W)."""
    n, c, h, w = x_nchw.shape
    hw = h * w
    rows = n * c

    # Contiguous reshape (no data movement): (N, C, H, W) -> (N*C, H*W).
    x2 = x_nchw.reshape(rows, hw)
    # Per-row scale: replicate the (C,) channel scale across the batch (tiny).
    s2 = (
        jnp.broadcast_to(implicit.reshape(1, c), (n, c))
        .reshape(rows, 1)
        .astype(x_nchw.dtype)
    )

    # Lane axis (H*W) tiled in multiples of 128, sublane axis (N*C) in
    # multiples of 8; ragged edges are handled by the pipeline (masked stores).
    t_hw = _pick_tile(hw, 128, 2048)
    t_rows = _pick_tile(rows, 8, 256)
    grid = (pl.cdiv(rows, t_rows), pl.cdiv(hw, t_hw))

    out2 = pl.pallas_call(
        _implicit_m_kernel,
        out_shape=jax.ShapeDtypeStruct((rows, hw), x_nchw.dtype),
        grid_spec=pltpu.PrefetchScalarGridSpec(
            num_scalar_prefetch=0,
            grid=grid,
            in_specs=[
                pl.BlockSpec((t_rows, t_hw), lambda i, j: (i, j)),
                pl.BlockSpec((t_rows, 1), lambda i, j: (i, 0)),
            ],
            out_specs=pl.BlockSpec((t_rows, t_hw), lambda i, j: (i, j)),
        ),
        compiler_params=pltpu.CompilerParams(
            dimension_semantics=("parallel", "parallel"),
        ),
    )(x2, s2)

    return out2.reshape(n, c, h, w)


if __name__ == "__main__":
    # Small shapes consistent with ImplicitM(channel=4) on a (2, 4, 16, 16) input.
    N, C, H, W = 2, 4, 16, 16

    key = jax.random.PRNGKey(0)
    kx, ki = jax.random.split(key)
    x = jax.random.normal(kx, (N, C, H, W), dtype=jnp.float32)
    # nn.init.normal_(mean=1.0, std=0.02) on a (1, C, 1, 1) parameter.
    implicit = 1.0 + 0.02 * jax.random.normal(ki, (1, C, 1, 1), dtype=jnp.float32)

    out = implicit_m(x, implicit)
    out = jax.block_until_ready(out)

    # Reference: implicit.expand_as(x) * x == broadcast multiply.
    ref = x * implicit
    np.testing.assert_allclose(np.asarray(out), np.asarray(ref), rtol=1e-6, atol=1e-6)
    assert out.shape == (N, C, H, W)

    # Ragged (non-(8,128)-aligned) shape to exercise the masked edge blocks.
    N2, C2, H2, W2 = 3, 5, 7, 9
    kx2, ki2 = jax.random.split(jax.random.PRNGKey(1))
    x2 = jax.random.normal(kx2, (N2, C2, H2, W2), dtype=jnp.float32)
    imp2 = 1.0 + 0.02 * jax.random.normal(ki2, (1, C2, 1, 1), dtype=jnp.float32)
    out2 = jax.block_until_ready(implicit_m(x2, imp2))
    np.testing.assert_allclose(
        np.asarray(out2), np.asarray(x2 * imp2), rtol=1e-6, atol=1e-6
    )

    print("KERNEL_OK")
</pallas_src>

<mosaic_0001>
module attributes {stable_mosaic.version = 11 : i64} {
  func.func @_implicit_m_kernel(%arg0: i32, %arg1: i32, %arg2: memref<8x256xf32, #tpu.memory_space<vmem>>, %arg3: memref<8x1xf32, #tpu.memory_space<vmem>>, %arg4: memref<8x256xf32, #tpu.memory_space<vmem>>) attributes {dimension_semantics = [#tpu.dimension_semantics<parallel>, #tpu.dimension_semantics<parallel>], iteration_bounds = array<i64: 1, 1>, scalar_prefetch = 0 : i64, scratch_operands = 0 : i64, tpu.core_type = #tpu.core_type<tc>, window_params = [{transform_indices = @transform_0, window_bounds = array<i64: 8, 256>}, {transform_indices = @transform_1, window_bounds = array<i64: 8, 1>}, {transform_indices = @transform_2, window_bounds = array<i64: 8, 256>}]} {
    %c0 = arith.constant 0 : index
    %c0_0 = arith.constant 0 : index
    %0 = vector.load %arg2[%c0, %c0_0] : memref<8x256xf32, #tpu.memory_space<vmem>>, vector<8x256xf32>
    %c0_1 = arith.constant 0 : index
    %c0_2 = arith.constant 0 : index
    %1 = vector.load %arg3[%c0_1, %c0_2] : memref<8x1xf32, #tpu.memory_space<vmem>>, vector<8x1xf32>
    %2 = vector.broadcast %1 : vector<8x1xf32> to vector<8x256xf32>
    %3 = arith.mulf %0, %2 : vector<8x256xf32>
    %c0_3 = arith.constant 0 : index
    %c0_4 = arith.constant 0 : index
    %4 = vector.load %arg4[%c0_3, %c0_4] : memref<8x256xf32, #tpu.memory_space<vmem>>, vector<8x256xf32>
    tpu.vector_store %arg4[%c0_3, %c0_4], %3 {strides = array<i32>} : memref<8x256xf32, #tpu.memory_space<vmem>>, vector<8x256xf32>,
    return
  }
  func.func @transform_0(%arg0: i32, %arg1: i32) -> (i32, i32) {
    %c0_i32 = arith.constant 0 : i32
    return %arg0, %arg1 : i32, i32
  }
  func.func @transform_1(%arg0: i32, %arg1: i32) -> (i32, i32) {
    %c0_i32 = arith.constant 0 : i32
    %c0_i32_0 = arith.constant 0 : i32
    return %arg0, %c0_i32 : i32, i32
  }
  func.func @transform_2(%arg0: i32, %arg1: i32) -> (i32, i32) {
    %c0_i32 = arith.constant 0 : i32
    return %arg0, %arg1 : i32, i32
  }
}

</mosaic_0001>

<llo_original>
// kernel: implicit_m.1
$region0: #{implicit_m.1}
  #allocation0 [shape = 'u32[]', space=smem, size = 0x4, offset = 0x4, fixed_abs, tag = 'smem constant byte address 0x4 - core index']
  #allocation1 [shape = 'u32[144,128]{1,0:T(1,128)}', space=vmem, size = 0x12000, scoped, tag = 'internal scratch']
  %s0 = inlined_call_operand.vmem [shape: f32[8,256], index: 0, kind: input, shape index: {}]
  %s1 = inlined_call_operand.vmem [shape: f32[8,1], index: 1, kind: input, shape index: {}]
  %s2 = inlined_call_operand.vmem [shape: f32[8,256], index: 2, kind: output, shape index: {}]
  %s3 = sld [smem:[#allocation0]]
  $region18: #{implicit_m.1} parent=0
    _
  %s5 = ssub.s32 1, %s3
  %s6 = scalar_select 0, %s5, %s3
  // Predicated region
  $region2: #{implicit_m.1} parent=0 // pred_check
    _
  $region3: #{implicit_m.1} parent=0 // pred_check_branch
    %8 = sbr.rel (0) target = $region5
  $region4: #{implicit_m.1} parent=0 // pred_region
    _
  $region5: #{implicit_m.1} parent=0 // pred_fallthru
    _
  // Predicated region
  $region6: #{implicit_m.1} parent=0 // pred_check
    _
  $region7: #{implicit_m.1} parent=0 // pred_check_branch
    %10 = sbr.rel (0) target = $region9
  $region8: #{implicit_m.1} parent=0 // pred_region
    _
  $region9: #{implicit_m.1} parent=0 // pred_fallthru
    _
  %v11 = vld [vmem:[%s0] sm:$0xff]
  %v12 = vld [vmem:[%s0 + $0x8] sm:$0xff]
  %v13 = vld [vmem:[%s1] sm:$0xff]
  %15 = vset.pattern.permute.xlu0 0
  %16 = vperm.xlu0 %15, %v13
  %v17 = vpop.permute.xlu0 %16
  %v19 = vmul.f32 %v11, %v17
  %v20 = vmul.f32 %v12, %v17
  %21 = vst [vmem:[%s2] sm:$0xff] %v19
  %22 = vst [vmem:[%s2 + $0x8] sm:$0xff] %v20
  // Predicated region
  $region10: #{implicit_m.1} parent=0 // pred_check
    _
  $region11: #{implicit_m.1} parent=0 // pred_check_branch
    %24 = sbr.rel (0) target = $region13
  $region12: #{implicit_m.1} parent=0 // pred_region
    _
  $region13: #{implicit_m.1} parent=0 // pred_fallthru
    _
  // Predicated region
  $region14: #{implicit_m.1} parent=0 // pred_check
    _
  $region15: #{implicit_m.1} parent=0 // pred_check_branch
    %26 = sbr.rel (0) target = $region17
  $region16: #{implicit_m.1} parent=0 // pred_region
    _
  $region17: #{implicit_m.1} parent=0 // pred_fallthru
    _

</llo_original>
